<compile_context>
chip_gen: v7x
topology: tpu7x:2x2x1
jax: 0.10.0
libtpu: 0.0.40
codegen_flags: <defaults>
</compile_context>

<pallas_src>
import functools

import jax
import jax.numpy as jnp
import numpy as np
from jax import lax
from jax.experimental import pallas as pl
from jax.experimental.pallas import tpu as pltpu


def _round_up(x, m):
    return ((x + m - 1) // m) * m


def _device_kind():
    try:
        return jax.devices()[0].device_kind.lower()
    except Exception:
        return ""


def _choose_bb(batch, n, multi_core, target_lanes=512):
    """Batch elements folded into the lane dim per grid step.

    Targets a lane-dense block (bb*n ~ target_lanes, multiple of 128 when
    possible); on multi-TC chips keeps >= 2 grid points so both cores get work.
    """
    bb = max(1, min(batch, target_lanes // max(n, 1)))
    if multi_core and batch >= 2:
        bb = min(bb, pl.cdiv(batch, 2))
    for cand in range(bb, 0, -1):          # prefer unmasked 128-lane tiles
        if (cand * n) % 128 == 0:
            return cand
    return bb


def _gca_kernel(g_ref, w_ref, gamma_ref, o_ref, *, bb, n, c, ci_pad):
    """One grid step: fused QKV projection + per-batch non-local attention.

    g_ref     : (1, Ca, bb*n)  pooled features (+ ones row for bias fold), lane-dense
    w_ref     : (R_pad, Ca)    stacked/padded [wq; wk; wv | bias] weight (resident)
    gamma_ref : (1,)           scalar in SMEM
    o_ref     : (1, C, bb*n)   sigmoid(gamma * attn_out + pooled), lane-dense
    """
    g_all = g_ref[0]                                          # (Ca, bb*n)

    # One fused matmul for q/k/v with biases folded in (full-lane MXU RHS).
    qkv = jnp.dot(w_ref[...], g_all, preferred_element_type=jnp.float32)

    # 8-aligned row slices; the zero-padded wq/wk rows produce exact zeros and
    # therefore contribute nothing to the energy contraction below.
    q = qkv[0:ci_pad]                                         # (ci_pad, bb*n)
    k = qkv[ci_pad:2 * ci_pad]                                # (ci_pad, bb*n)
    v = qkv[2 * ci_pad:2 * ci_pad + c]                        # (c,      bb*n)
    g = g_all[0:c].astype(jnp.float32)                        # residual features

    gamma = gamma_ref[0]                                      # scalar from SMEM

    # Per-batch attention over static lane slices.  bb is kept small (<= 8) by
    # the wrapper, so this bounded unroll does not blow up vreg live ranges:
    # each iteration's (n, n) energy/att temporaries die before the next starts.
    parts = []
    for b in range(bb):
        sl = slice(b * n, (b + 1) * n)
        qb, kb, vb, gb = q[:, sl], k[:, sl], v[:, sl], g[:, sl]

        # energy[i, j] = sum_c qb[c, i] * kb[c, j]  -> (n, n), no q relayout.
        energy = lax.dot_general(qb, kb, (((0,), (0,)), ((), ())),
                                 preferred_element_type=jnp.float32)

        # softmax along lanes; reciprocal uses the otherwise-idle EUP slot.
        m = jnp.max(energy, axis=-1, keepdims=True)
        e = jnp.exp(energy - m)
        att = e * pl.reciprocal(jnp.sum(e, axis=-1, keepdims=True), approx=True)

        # out[c, i] = sum_j vb[c, j] * att[i, j]  -> (c, n).
        # NOTE: the alternative orientation (energy^T + axis-0 softmax) only
        # pays off if the XLU slot saturates; keep the cheaper softmax here.
        outb = lax.dot_general(vb, att, (((1,), (1,)), ((), ())),
                               preferred_element_type=jnp.float32)

        parts.append(jax.nn.sigmoid(gamma * outb + gb))

    # ONE lane-dense store of the whole (c, bb*n) slab per grid step.
    res = parts[0] if bb == 1 else jnp.concatenate(parts, axis=-1)
    o_ref[0] = res.astype(o_ref.dtype)


def gca_channel_pallas(x, wq, bq, wk, bk, wv, bv, gamma, scale,
                       *, compute_dtype=jnp.float32, target_lanes=512,
                       multi_core=None):
    """GCA_Channel forward (att_mode='origin').

    x      : (B, C, H, W), H % scale == 0, W % scale == 0
    wq/wk  : (Ci, C), bq/bk : (Ci, 1)   (Ci = C // reduce_ratio_nl)
    wv     : (C, C),  bv    : (C, 1)
    gamma  : (1,) residual scale of the NonLocalBlock
    compute_dtype : dtype of the matmul operands shipped to the kernel
        (jnp.bfloat16 recommended on v6e/v7x; accumulation stays f32).
    """
    B, C, H, W = x.shape
    Ci = wq.shape[0]
    S = scale
    # TODO(synk): PyTorch AdaptiveMaxPool2d also handles non-divisible H/W with
    # uneven windows; only the divisible case is reproduced here.
    assert H % S == 0 and W % S == 0
    kh, kw = H // S, W // S
    N = S * S

    if multi_core is None:
        multi_core = "v7" in _device_kind()

    # --- AdaptiveMaxPool2d(scale) hoisted to the wrapper (plain XLA) ----------
    pooled = x.reshape(B, C, S, kh, S, kw).max(axis=(3, 5)).reshape(B, C, N)

    # --- batch folding into the lane dim --------------------------------------
    bb = _choose_bb(B, N, multi_core, target_lanes)
    G = pl.cdiv(B, bb)
    Bp = G * bb
    L = bb * N

    # --- padded / stacked operands ---------------------------------------------
    ci_pad = _round_up(Ci, 8)              # q/k row blocks, sublane aligned
    r_pad = _round_up(2 * ci_pad + C, 8)   # stacked weight rows
    ca = _round_up(C + 1, 8)               # channels + ones row (bias fold)

    # pooled features + ones row (folded bias), channel-padded to `ca`.
    g_aug = jnp.zeros((Bp, ca, N), compute_dtype)
    g_aug = g_aug.at[:B, :C].set(pooled.astype(compute_dtype))
    g_aug = g_aug.at[:, C].set(1.0)

    # stacked weight: rows [wq|0 ; wk|0 ; wv]; column C carries the biases.
    w_stack = jnp.zeros((r_pad, ca), compute_dtype)
    w_stack = w_stack.at[0:Ci, 0:C].set(wq.astype(compute_dtype))
    w_stack = w_stack.at[0:Ci, C].set(bq[:, 0].astype(compute_dtype))
    w_stack = w_stack.at[ci_pad:ci_pad + Ci, 0:C].set(wk.astype(compute_dtype))
    w_stack = w_stack.at[ci_pad:ci_pad + Ci, C].set(bk[:, 0].astype(compute_dtype))
    w_stack = w_stack.at[2 * ci_pad:2 * ci_pad + C, 0:C].set(wv.astype(compute_dtype))
    w_stack = w_stack.at[2 * ci_pad:2 * ci_pad + C, C].set(bv[:, 0].astype(compute_dtype))

    # (Bp, ca, N) -> (G, ca, bb*N): batches of a group contiguous along lanes.
    # Skip the fold/unfold transposes entirely when bb == 1 (they'd be pure
    # XLA-launch overhead at small batch sizes).
    if bb == 1:
        g_grp = g_aug
    else:
        g_grp = (g_aug.reshape(G, bb, ca, N)
                 .transpose(0, 2, 1, 3)
                 .reshape(G, ca, L))

    kernel = functools.partial(_gca_kernel, bb=bb, n=N, c=C, ci_pad=ci_pad)

    out = pl.pallas_call(
        kernel,
        out_shape=jax.ShapeDtypeStruct((G, C, L), x.dtype),
        grid_spec=pltpu.PrefetchScalarGridSpec(
            num_scalar_prefetch=0,
            grid=(G,),
            in_specs=[
                pl.BlockSpec((1, ca, L), lambda i: (i, 0, 0)),      # pooled feats
                pl.BlockSpec((r_pad, ca), lambda i: (0, 0)),        # stacked weight
                pl.BlockSpec(memory_space=pltpu.MemorySpace.SMEM),  # gamma scalar
            ],
            out_specs=pl.BlockSpec((1, C, L), lambda i: (i, 0, 0)),
        ),
        compiler_params=pltpu.CompilerParams(
            dimension_semantics=("parallel",)),
    )(g_grp, w_stack, gamma.astype(jnp.float32))

    # (G, C, bb*N) -> (B, C, S, S)
    if bb == 1:
        out_b = out.reshape(Bp, C, N)
    else:
        out_b = (out.reshape(G, C, bb, N)
                 .transpose(0, 2, 1, 3)
                 .reshape(Bp, C, N))
    return out_b[:B].reshape(B, C, S, S)


def gca_channel_ref(x, wq, bq, wk, bk, wv, bv, gamma, scale):
    """Pure-JAX reference (mirrors the PyTorch forward)."""
    B, C, H, W = x.shape
    kh, kw = H // scale, W // scale
    p = x.reshape(B, C, scale, kh, scale, kw).max(axis=(3, 5))   # adaptive max pool
    g = p.reshape(B, C, scale * scale)
    q = jnp.einsum('oc,bcn->bon', wq, g) + bq[None]
    k = jnp.einsum('oc,bcn->bon', wk, g) + bk[None]
    v = jnp.einsum('oc,bcn->bon', wv, g) + bv[None]
    energy = jnp.einsum('bci,bcj->bij', q, k)
    att = jax.nn.softmax(energy, axis=-1)
    out = jnp.einsum('bcj,bij->bci', v, att)
    res = jax.nn.sigmoid(gamma[0] * out + g)
    return res.reshape(B, C, scale, scale)


if __name__ == "__main__":
    # Small shapes consistent with the module:
    # planes=16, scale=8, reduce_ratio_nl=4 -> inter_planes=4, pooled grid 8x8.
    B, C, H, W = 2, 16, 16, 16
    scale = 8
    reduce_ratio_nl = 4
    Ci = C // reduce_ratio_nl

    key = jax.random.PRNGKey(0)
    ks = jax.random.split(key, 8)
    x = jax.random.normal(ks[0], (B, C, H, W), dtype=jnp.float32)

    wq = 0.2 * jax.random.normal(ks[1], (Ci, C), dtype=jnp.float32)
    bq = 0.1 * jax.random.normal(ks[2], (Ci, 1), dtype=jnp.float32)
    wk = 0.2 * jax.random.normal(ks[3], (Ci, C), dtype=jnp.float32)
    bk = 0.1 * jax.random.normal(ks[4], (Ci, 1), dtype=jnp.float32)
    wv = 0.2 * jax.random.normal(ks[5], (C, C), dtype=jnp.float32)
    bv = 0.1 * jax.random.normal(ks[6], (C, 1), dtype=jnp.float32)
    # PyTorch inits gamma to 0 (identity + sigmoid); use a nonzero value so the
    # attention path is exercised numerically.
    gamma = jnp.full((1,), 0.5, dtype=jnp.float32)

    ref = jax.block_until_ready(
        gca_channel_ref(x, wq, bq, wk, bk, wv, bv, gamma, scale))

    # f32 operands (works on all TPU generations).
    out = jax.block_until_ready(
        gca_channel_pallas(x, wq, bq, wk, bk, wv, bv, gamma, scale))
    np.testing.assert_allclose(np.asarray(out), np.asarray(ref),
                               rtol=1e-2, atol=1e-2)
    assert out.shape == (B, C, scale, scale)

    # bf16 operands (review recommendation): exercise only on chips with a
    # bf16-native VPU/MXU (v6e/v7x); accumulation stays f32 so error is small.
    kind = _device_kind()
    if ("v6" in kind) or ("v7" in kind):
        out_bf16 = jax.block_until_ready(
            gca_channel_pallas(x, wq, bq, wk, bk, wv, bv, gamma, scale,
                               compute_dtype=jnp.bfloat16))
        np.testing.assert_allclose(np.asarray(out_bf16), np.asarray(ref),
                                   rtol=5e-2, atol=5e-2)

    print("KERNEL_OK")
</pallas_src>

<mosaic_0001>
module attributes {stable_mosaic.version = 11 : i64} {
  func.func @_gca_kernel(%arg0: i32, %arg1: memref<1x24x128xf32, #tpu.memory_space<vmem>>, %arg2: memref<32x24xf32, #tpu.memory_space<vmem>>, %arg3: memref<1xf32, #tpu.memory_space<smem>>, %arg4: memref<1x16x128xf32, #tpu.memory_space<vmem>>) attributes {dimension_semantics = [#tpu.dimension_semantics<parallel>], iteration_bounds = array<i64: 1>, scalar_prefetch = 0 : i64, scratch_operands = 0 : i64, tpu.core_type = #tpu.core_type<tc>, window_params = [{transform_indices = @transform_0, window_bounds = array<i64: 1, 24, 128>}, {pipeline_mode = #tpu.pipeline_mode<synchronous>, transform_indices = @transform_1, window_bounds = array<i64: 32, 24>}, {transform_indices = @transform_2, window_bounds = array<i64: 1>}, {transform_indices = @transform_3, window_bounds = array<i64: 1, 16, 128>}]} {
    %c0 = arith.constant 0 : index
    %c0_0 = arith.constant 0 : index
    %c0_1 = arith.constant 0 : index
    %0 = vector.load %arg1[%c0, %c0_0, %c0_1] : memref<1x24x128xf32, #tpu.memory_space<vmem>>, vector<1x24x128xf32>
    %1 = vector.shape_cast %0 : vector<1x24x128xf32> to vector<24x128xf32>
    %c0_2 = arith.constant 0 : index
    %c0_3 = arith.constant 0 : index
    %2 = vector.load %arg2[%c0_2, %c0_3] : memref<32x24xf32, #tpu.memory_space<vmem>>, vector<32x24xf32>
    %cst = arith.constant dense<0.000000e+00> : vector<32x128xf32>
    %3 = tpu.matmul %2, %1, %cst {dimension_numbers = #tpu.dot_dimension_numbers<[1], [0], [0], [1], [0, 0, 1, 1], [], []>} : vector<32x24xf32>, vector<24x128xf32>, vector<32x128xf32> -> vector<32x128xf32>
    %4 = vector.extract_strided_slice %3 {offsets = [0, 0], sizes = [8, 128], strides = [1, 1]} : vector<32x128xf32> to vector<8x128xf32>
    %5 = vector.extract_strided_slice %3 {offsets = [8, 0], sizes = [8, 128], strides = [1, 1]} : vector<32x128xf32> to vector<8x128xf32>
    %6 = vector.extract_strided_slice %3 {offsets = [16, 0], sizes = [16, 128], strides = [1, 1]} : vector<32x128xf32> to vector<16x128xf32>
    %7 = vector.extract_strided_slice %1 {offsets = [0, 0], sizes = [16, 128], strides = [1, 1]} : vector<24x128xf32> to vector<16x128xf32>
    %c0_4 = arith.constant 0 : index
    %8 = memref.load %arg3[%c0_4] : memref<1xf32, #tpu.memory_space<smem>>
    %9 = vector.extract_strided_slice %4 {offsets = [0, 0], sizes = [8, 64], strides = [1, 1]} : vector<8x128xf32> to vector<8x64xf32>
    %10 = vector.extract_strided_slice %5 {offsets = [0, 0], sizes = [8, 64], strides = [1, 1]} : vector<8x128xf32> to vector<8x64xf32>
    %11 = vector.extract_strided_slice %6 {offsets = [0, 0], sizes = [16, 64], strides = [1, 1]} : vector<16x128xf32> to vector<16x64xf32>
    %12 = vector.extract_strided_slice %7 {offsets = [0, 0], sizes = [16, 64], strides = [1, 1]} : vector<16x128xf32> to vector<16x64xf32>
    %cst_5 = arith.constant dense<0.000000e+00> : vector<64x64xf32>
    %13 = tpu.matmul %9, %10, %cst_5 {dimension_numbers = #tpu.dot_dimension_numbers<[0], [0], [1], [1], [0, 1, 1, 1], [], []>} : vector<8x64xf32>, vector<8x64xf32>, vector<64x64xf32> -> vector<64x64xf32>
    %cst_6 = arith.constant dense<0xFF800000> : vector<64xf32>
    %14 = vector.multi_reduction <maximumf>, %13, %cst_6 [1] : vector<64x64xf32> to vector<64xf32>
    %15 = vector.shape_cast %14 : vector<64xf32> to vector<64x1xf32>
    %16 = vector.broadcast %15 : vector<64x1xf32> to vector<64x64xf32>
    %17 = arith.subf %13, %16 : vector<64x64xf32>
    %18 = math.exp %17 : vector<64x64xf32>
    %cst_7 = arith.constant dense<0.000000e+00> : vector<64xf32>
    %19 = vector.multi_reduction <add>, %18, %cst_7 [1] : vector<64x64xf32> to vector<64xf32>
    %20 = vector.shape_cast %19 : vector<64xf32> to vector<64x1xf32>
    %21 = tpu.reciprocal %20 {approx = true} : vector<64x1xf32> -> vector<64x1xf32>
    %22 = vector.broadcast %21 : vector<64x1xf32> to vector<64x64xf32>
    %23 = arith.mulf %18, %22 : vector<64x64xf32>
    %cst_8 = arith.constant dense<0.000000e+00> : vector<16x64xf32>
    %24 = tpu.matmul %11, %23, %cst_8 {dimension_numbers = #tpu.dot_dimension_numbers<[1], [1], [0], [0], [0, 0, 1, 0], [], []>} : vector<16x64xf32>, vector<64x64xf32>, vector<16x64xf32> -> vector<16x64xf32>
    %25 = vector.broadcast %8 : f32 to vector<16x64xf32>
    %26 = arith.mulf %25, %24 : vector<16x64xf32>
    %27 = arith.addf %26, %12 : vector<16x64xf32>
    %28 = arith.negf %27 : vector<16x64xf32>
    %29 = math.exp %28 : vector<16x64xf32>
    %cst_9 = arith.constant 1.000000e+00 : f32
    %30 = vector.broadcast %cst_9 : f32 to vector<16x64xf32>
    %31 = arith.addf %30, %29 : vector<16x64xf32>
    %32 = arith.divf %30, %31 : vector<16x64xf32>
    %33 = vector.extract_strided_slice %4 {offsets = [0, 64], sizes = [8, 64], strides = [1, 1]} : vector<8x128xf32> to vector<8x64xf32>
    %34 = vector.extract_strided_slice %5 {offsets = [0, 64], sizes = [8, 64], strides = [1, 1]} : vector<8x128xf32> to vector<8x64xf32>
    %35 = vector.extract_strided_slice %6 {offsets = [0, 64], sizes = [16, 64], strides = [1, 1]} : vector<16x128xf32> to vector<16x64xf32>
    %36 = vector.extract_strided_slice %7 {offsets = [0, 64], sizes = [16, 64], strides = [1, 1]} : vector<16x128xf32> to vector<16x64xf32>
    %cst_10 = arith.constant dense<0.000000e+00> : vector<64x64xf32>
    %37 = tpu.matmul %33, %34, %cst_10 {dimension_numbers = #tpu.dot_dimension_numbers<[0], [0], [1], [1], [0, 1, 1, 1], [], []>} : vector<8x64xf32>, vector<8x64xf32>, vector<64x64xf32> -> vector<64x64xf32>
    %cst_11 = arith.constant dense<0xFF800000> : vector<64xf32>
    %38 = vector.multi_reduction <maximumf>, %37, %cst_11 [1] : vector<64x64xf32> to vector<64xf32>
    %39 = vector.shape_cast %38 : vector<64xf32> to vector<64x1xf32>
    %40 = vector.broadcast %39 : vector<64x1xf32> to vector<64x64xf32>
    %41 = arith.subf %37, %40 : vector<64x64xf32>
    %42 = math.exp %41 : vector<64x64xf32>
    %cst_12 = arith.constant dense<0.000000e+00> : vector<64xf32>
    %43 = vector.multi_reduction <add>, %42, %cst_12 [1] : vector<64x64xf32> to vector<64xf32>
    %44 = vector.shape_cast %43 : vector<64xf32> to vector<64x1xf32>
    %45 = tpu.reciprocal %44 {approx = true} : vector<64x1xf32> -> vector<64x1xf32>
    %46 = vector.broadcast %45 : vector<64x1xf32> to vector<64x64xf32>
    %47 = arith.mulf %42, %46 : vector<64x64xf32>
    %cst_13 = arith.constant dense<0.000000e+00> : vector<16x64xf32>
    %48 = tpu.matmul %35, %47, %cst_13 {dimension_numbers = #tpu.dot_dimension_numbers<[1], [1], [0], [0], [0, 0, 1, 0], [], []>} : vector<16x64xf32>, vector<64x64xf32>, vector<16x64xf32> -> vector<16x64xf32>
    %49 = vector.broadcast %8 : f32 to vector<16x64xf32>
    %50 = arith.mulf %49, %48 : vector<16x64xf32>
    %51 = arith.addf %50, %36 : vector<16x64xf32>
    %52 = arith.negf %51 : vector<16x64xf32>
    %53 = math.exp %52 : vector<16x64xf32>
    %cst_14 = arith.constant 1.000000e+00 : f32
    %54 = vector.broadcast %cst_14 : f32 to vector<16x64xf32>
    %55 = arith.addf %54, %53 : vector<16x64xf32>
    %56 = arith.divf %54, %55 : vector<16x64xf32>
    %57 = tpu.concatenate %32, %56 in 1 : vector<16x64xf32>, vector<16x64xf32> -> vector<16x128xf32>
    %c0_15 = arith.constant 0 : index
    %c0_16 = arith.constant 0 : index
    %c0_17 = arith.constant 0 : index
    %58 = vector.load %arg4[%c0_15, %c0_16, %c0_17] : memref<1x16x128xf32, #tpu.memory_space<vmem>>, vector<1x16x128xf32>
    %59 = vector.shape_cast %58 : vector<1x16x128xf32> to vector<16x128xf32>
    %60 = vector.shape_cast %57 : vector<16x128xf32> to vector<1x16x128xf32>
    tpu.vector_store %arg4[%c0_15, %c0_16, %c0_17], %60 {strides = array<i32>} : memref<1x16x128xf32, #tpu.memory_space<vmem>>, vector<1x16x128xf32>,
    return
  }
  func.func @transform_0(%arg0: i32) -> (i32, i32, i32) {
    %c0_i32 = arith.constant 0 : i32
    %c0_i32_0 = arith.constant 0 : i32
    %c0_i32_1 = arith.constant 0 : i32
    return %arg0, %c0_i32, %c0_i32_0 : i32, i32, i32
  }
  func.func @transform_1(%arg0: i32) -> (i32, i32) {
    %c0_i32 = arith.constant 0 : i32
    %c0_i32_0 = arith.constant 0 : i32
    %c0_i32_1 = arith.constant 0 : i32
    return %c0_i32, %c0_i32_0 : i32, i32
  }
  func.func @transform_2(%arg0: i32) -> i32 {
    %c0_i32 = arith.constant 0 : i32
    %c0_i32_0 = arith.constant 0 : i32
    return %c0_i32 : i32
  }
  func.func @transform_3(%arg0: i32) -> (i32, i32, i32) {
    %c0_i32 = arith.constant 0 : i32
    %c0_i32_0 = arith.constant 0 : i32
    %c0_i32_1 = arith.constant 0 : i32
    return %arg0, %c0_i32, %c0_i32_0 : i32, i32, i32
  }
}

</mosaic_0001>

<llo_original>
// kernel: tpu_custom_call.1
$region0: #{tpu_custom_call.1}
  #allocation0 [shape = 'u32[]', space=smem, size = 0x4, offset = 0x4, fixed_abs, tag = 'smem constant byte address 0x4 - core index']
  #allocation1 [shape = 'u32[144,128]{1,0:T(1,128)}', space=vmem, size = 0x12000, scoped, tag = 'internal scratch']
  #allocation2 [shape = 'f32[1]{0:T(128)S(6)}', space=smem, size = 0x200, scoped, tag = 'scoped memory for tpu_custom_call.1']
  %s0 = inlined_call_operand.vmem [shape: f32[1,24,128], index: 0, kind: input, shape index: {}]
  %s1 = inlined_call_operand.vmem [shape: f32[32,24], index: 1, kind: input, shape index: {}]
  %s2 = inlined_call_operand.<no memory space> [shape: f32[1], index: 2, kind: input, shape index: {}]
  %s3 = inlined_call_operand.hbm [shape: f32[1,16,128], index: 3, kind: output, shape index: {}]
  %s4 = sld [smem:[#allocation0]]
  $region22: #{tpu_custom_call.1} parent=0
    _
  %s6 = ssub.s32 1, %s4
  %s7 = scalar_select 0, %s6, %s4
  %8 = sst [smem:[#allocation2]] %s2
  $region1: #{tpu_custom_call.1} parent=0
    #allocation3 [shape = 'u8[8192]{0}', space=vmem, size = 0x2000, scoped, tag = 'output window, operand 0, single buffered']
    #allocation4 [shape = 's32[1]{0}', space=sflag, size = 0x4, scoped, tag = 'scoped memory for tpu_custom_call.1']
    %9 = vsyncpa [#allocation4], 0
    // Predicated region
    $region2: #{tpu_custom_call.1} parent=1 // pred_check
      _
    $region3: #{tpu_custom_call.1} parent=1 // pred_check_branch
      %11 = sbr.rel (0) target = $region5
    $region4: #{tpu_custom_call.1} parent=1 // pred_region
      _
    $region5: #{tpu_custom_call.1} parent=1 // pred_fallthru
      _
    // Predicated region
    $region6: #{tpu_custom_call.1} parent=1 // pred_check
      _
    $region7: #{tpu_custom_call.1} parent=1 // pred_check_branch
      %13 = sbr.rel (0) target = $region9
    $region8: #{tpu_custom_call.1} parent=1 // pred_region
      _
    $region9: #{tpu_custom_call.1} parent=1 // pred_fallthru
      _
    // Predicated region
    $region10: #{tpu_custom_call.1} parent=1 // pred_check
      _
    $region11: #{tpu_custom_call.1} parent=1 // pred_check_branch
      %15 = sbr.rel (0) target = $region13
    $region12: #{tpu_custom_call.1} parent=1 // pred_region
      _
    $region13: #{tpu_custom_call.1} parent=1 // pred_fallthru
      _
    %v16 = vld [vmem:[%s0] sm:$0xff]
    %v17 = vld [vmem:[%s0 + $0x8] sm:$0xff]
    %v18 = vld [vmem:[%s0 + $0x10] sm:$0xff]
    %v19 = vld [vmem:[%s1] sm:$0xff]
    %v20 = vld [vmem:[%s1 + $0x8] sm:$0xff]
    %v21 = vld [vmem:[%s1 + $0x10] sm:$0xff]
    %v22 = vld [vmem:[%s1 + $0x18] sm:$0xff]
    %vm23 = vcmask 195584
    %v25 = vsel %vm23, %v19, 0
    %v28 = vsel %vm23, %v20, 0
    %v31 = vsel %vm23, %v21, 0
    %v34 = vsel %vm23, %v22, 0
    %36 = vmatprep.subr.mxu0 0.0
    %37 = vmatpush1.msra.mxu0 %v16
    %38 = vmatprep.subr.mxu0 0.0
    %39 = vmatpush1.msra.mxu0 %v17
    %40 = vmatprep.subr.mxu0 0.0
    %41 = vmatpush1.msra.mxu0 %v18
    %42 = vmatprep.subr.mxu0 0.0
    %43 = vmatpush1.msra.mxu0 0.0
    %44 = vmatprep.subr.mxu0 0.0
    %45 = vmatpush1.msra.mxu0 0.0
    %46 = vmatprep.subr.mxu0 0.0
    %47 = vmatpush1.msra.mxu0 0.0
    %48 = vmatprep.subr.mxu0 0.0
    %49 = vmatpush1.msra.mxu0 0.0
    %50 = vmatprep.subr.mxu0 0.0
    %51 = vmatpush1.msra.mxu0 0.0
    %52 = vmatprep.subr.mxu0 0.0
    %53 = vmatpush1.msra.mxu0 0.0
    %54 = vmatprep.subr.mxu0 0.0
    %55 = vmatpush1.msra.mxu0 0.0
    %56 = vmatprep.subr.mxu0 0.0
    %57 = vmatpush1.msra.mxu0 0.0
    %58 = vmatprep.subr.mxu0 0.0
    %59 = vmatpush1.msra.mxu0 0.0
    %60 = vmatprep.subr.mxu0 0.0
    %61 = vmatpush1.msra.mxu0 0.0
    %62 = vmatprep.subr.mxu0 0.0
    %63 = vmatpush1.msra.mxu0 0.0
    %64 = vmatprep.subr.mxu0 0.0
    %65 = vmatpush1.msra.mxu0 0.0
    %66 = vmatprep.subr.mxu0 0.0
    %67 = vmatpush1.msra.mxu0 0.0
    %68 = vmatprep.subr.mxu0 0.0
    %69 = vmatpush1.msra.mxu0 0.0
    %70 = vmatprep.subr.mxu0 0.0
    %71 = vmatpush1.msra.mxu0 0.0
    %72 = vmatprep.subr.mxu0 0.0
    %73 = vmatpush1.msra.mxu0 0.0
    %74 = vmatprep.subr.mxu0 0.0
    %75 = vmatpush1.msra.mxu0 0.0
    %76 = vmatprep.subr.mxu0 0.0
    %77 = vmatpush1.msra.mxu0 0.0
    %78 = vmatprep.subr.mxu0 0.0
    %79 = vmatpush1.msra.mxu0 0.0
    %80 = vmatprep.subr.mxu0 0.0
    %81 = vmatpush1.msra.mxu0 0.0
    %82 = vmatprep.subr.mxu0 0.0
    %83 = vmatpush1.msra.mxu0 0.0
    %84 = vmatprep.subr.mxu0 0.0
    %85 = vmatpush1.msra.mxu0 0.0
    %86 = vmatprep.subr.mxu0 0.0
    %87 = vmatpush1.msra.mxu0 0.0
    %88 = vmatprep.subr.mxu0 0.0
    %89 = vmatpush1.msra.mxu0 0.0
    %90 = vmatprep.subr.mxu0 0.0
    %91 = vmatpush1.msra.mxu0 0.0
    %92 = vmatprep.subr.mxu0 0.0
    %93 = vmatpush1.msra.mxu0 0.0
    %94 = vmatprep.subr.mxu0 0.0
    %95 = vmatpush1.msra.mxu0 0.0
    %96 = vmatprep.subr.mxu0 0.0
    %97 = vmatpush1.msra.mxu0 0.0
    %98 = vmatprep.subr.mxu0 0.0
    %99 = vmatpush1.msra.mxu0 0.0
    %100 = vmatprep.mubr.f32.mxu0 0.0
    %101 = vmatmul.mubr.f32.gmra.mrb[0].mxu0 %v25
    %v102 = vpop.f32.mrb[0].mxu0
    %v103 = vadd.f32 0.0, %v102
    %v104 = vpop.f32.mrb[0].mxu0
    %105 = vmatprep.mubr.f32.mxu0 0.0
    %106 = vmatmul.mubr.f32.gmra.mrb[0].mxu0 %v28
    %v107 = vpop.f32.mrb[0].mxu0
    %v108 = vadd.f32 0.0, %v107
    %v109 = vpop.f32.mrb[0].mxu0
    %110 = vmatprep.mubr.f32.mxu0 0.0
    %111 = vmatmul.mubr.f32.gmra.mrb[0].mxu0 %v31
    %v112 = vpop.f32.mrb[0].mxu0
    %v113 = vadd.f32 0.0, %v112
    %v114 = vpop.f32.mrb[0].mxu0
    %115 = vmatprep.mubr.f32.mxu0 0.0
    %116 = vmatmul.mubr.f32.gmra.mrb[0].mxu0 %v34
    %v117 = vpop.f32.mrb[0].mxu0
    %v118 = vadd.f32 0.0, %v117
    %v119 = vpop.f32.mrb[0].mxu0
    %120 = vdwg.mxu0
    %s121 = sld [smem:[#allocation2]]
    %122 = vxpose.xlu0.b32.start [1/16] %v103, 128
    %123 = vxpose.xlu0.b32.cont [2/16] 0.0, 128
    %124 = vxpose.xlu0.b32.cont [3/16] 0.0, 128
    %125 = vxpose.xlu0.b32.cont [4/16] 0.0, 128
    %126 = vxpose.xlu0.b32.cont [5/16] 0.0, 128
    %127 = vxpose.xlu0.b32.cont [6/16] 0.0, 128
    %128 = vxpose.xlu0.b32.cont [7/16] 0.0, 128
    %129 = vxpose.xlu0.b32.cont [8/16] 0.0, 128
    %130 = vxpose.xlu0.b32.cont [9/16] 0.0, 128
    %131 = vxpose.xlu0.b32.cont [10/16] 0.0, 128
    %132 = vxpose.xlu0.b32.cont [11/16] 0.0, 128
    %133 = vxpose.xlu0.b32.cont [12/16] 0.0, 128
    %134 = vxpose.xlu0.b32.cont [13/16] 0.0, 128
    %135 = vxpose.xlu0.b32.cont [14/16] 0.0, 128
    %136 = vxpose.xlu0.b32.cont [15/16] 0.0, 128
    %137 = vxpose.xlu0.b32.end [16/16] 0.0, 128
    %v138 = vpop.trf.xlu0
    %v139 = vpop.trf.xlu0
    %v140 = vpop.trf.xlu0
    %v141 = vpop.trf.xlu0
    %v142 = vpop.trf.xlu0
    %v143 = vpop.trf.xlu0
    %v144 = vpop.trf.xlu0
    %v145 = vpop.trf.xlu0
    %v146 = vpop.trf.xlu0
    %v147 = vpop.trf.xlu0
    %v148 = vpop.trf.xlu0
    %v149 = vpop.trf.xlu0
    %v150 = vpop.trf.xlu0
    %v151 = vpop.trf.xlu0
    %v152 = vpop.trf.xlu0
    %v153 = vpop.trf.xlu0
    %vm154 = vcmask 64512
    %v156 = vsel %vm154, %v138, 0
    %v159 = vsel %vm154, %v139, 0
    %v162 = vsel %vm154, %v140, 0
    %v165 = vsel %vm154, %v141, 0
    %v168 = vsel %vm154, %v142, 0
    %v171 = vsel %vm154, %v143, 0
    %v174 = vsel %vm154, %v144, 0
    %v177 = vsel %vm154, %v145, 0
    %179 = vmatprep.subr.mxu0 0.0
    %180 = vmatpush1.msra.mxu0 %v108
    %181 = vmatprep.subr.mxu0 0.0
    %182 = vmatpush1.msra.mxu0 0.0
    %183 = vmatprep.subr.mxu0 0.0
    %184 = vmatpush1.msra.mxu0 0.0
    %185 = vmatprep.subr.mxu0 0.0
    %186 = vmatpush1.msra.mxu0 0.0
    %187 = vmatprep.subr.mxu0 0.0
    %188 = vmatpush1.msra.mxu0 0.0
    %189 = vmatprep.subr.mxu0 0.0
    %190 = vmatpush1.msra.mxu0 0.0
    %191 = vmatprep.subr.mxu0 0.0
    %192 = vmatpush1.msra.mxu0 0.0
    %193 = vmatprep.subr.mxu0 0.0
    %194 = vmatpush1.msra.mxu0 0.0
    %195 = vmatprep.subr.mxu0 0.0
    %196 = vmatpush1.msra.mxu0 0.0
    %197 = vmatprep.subr.mxu0 0.0
    %198 = vmatpush1.msra.mxu0 0.0
    %199 = vmatprep.subr.mxu0 0.0
    %200 = vmatpush1.msra.mxu0 0.0
    %201 = vmatprep.subr.mxu0 0.0
    %202 = vmatpush1.msra.mxu0 0.0
    %203 = vmatprep.subr.mxu0 0.0
    %204 = vmatpush1.msra.mxu0 0.0
    %205 = vmatprep.subr.mxu0 0.0
    %206 = vmatpush1.msra.mxu0 0.0
    %207 = vmatprep.subr.mxu0 0.0
    %208 = vmatpush1.msra.mxu0 0.0
    %209 = vmatprep.subr.mxu0 0.0
    %210 = vmatpush1.msra.mxu0 0.0
    %211 = vmatprep.subr.mxu0 0.0
    %212 = vmatpush1.msra.mxu0 0.0
    %213 = vmatprep.subr.mxu0 0.0
    %214 = vmatpush1.msra.mxu0 0.0
    %215 = vmatprep.subr.mxu0 0.0
    %216 = vmatpush1.msra.mxu0 0.0
    %217 = vmatprep.subr.mxu0 0.0
    %218 = vmatpush1.msra.mxu0 0.0
    %219 = vmatprep.subr.mxu0 0.0
    %220 = vmatpush1.msra.mxu0 0.0
    %221 = vmatprep.subr.mxu0 0.0
    %222 = vmatpush1.msra.mxu0 0.0
    %223 = vmatprep.subr.mxu0 0.0
    %224 = vmatpush1.msra.mxu0 0.0
    %225 = vmatprep.subr.mxu0 0.0
    %226 = vmatpush1.msra.mxu0 0.0
    %227 = vmatprep.subr.mxu0 0.0
    %228 = vmatpush1.msra.mxu0 0.0
    %229 = vmatprep.subr.mxu0 0.0
    %230 = vmatpush1.msra.mxu0 0.0
    %231 = vmatprep.subr.mxu0 0.0
    %232 = vmatpush1.msra.mxu0 0.0
    %233 = vmatprep.subr.mxu0 0.0
    %234 = vmatpush1.msra.mxu0 0.0
    %235 = vmatprep.subr.mxu0 0.0
    %236 = vmatpush1.msra.mxu0 0.0
    %237 = vmatprep.subr.mxu0 0.0
    %238 = vmatpush1.msra.mxu0 0.0
    %239 = vmatprep.subr.mxu0 0.0
    %240 = vmatpush1.msra.mxu0 0.0
    %241 = vmatprep.subr.mxu0 0.0
    %242 = vmatpush1.msra.mxu0 0.0
    %243 = vmatprep.mubr.f32.mxu0 0.0
    %244 = vmatmul.mubr.f32.gmra.mrb[0].mxu0 %v156
    %v245 = vpop.f32.mrb[0].mxu0
    %v246 = vadd.f32 0.0, %v245
    %v247 = vpop.f32.mrb[0].mxu0
    %248 = vmatprep.mubr.f32.mxu0 0.0
    %249 = vmatmul.mubr.f32.gmra.mrb[0].mxu0 %v159
    %v250 = vpop.f32.mrb[0].mxu0
    %v251 = vadd.f32 0.0, %v250
    %v252 = vpop.f32.mrb[0].mxu0
    %253 = vmatprep.mubr.f32.mxu0 0.0
    %254 = vmatmul.mubr.f32.gmra.mrb[0].mxu0 %v162
    %v255 = vpop.f32.mrb[0].mxu0
    %v256 = vadd.f32 0.0, %v255
    %v257 = vpop.f32.mrb[0].mxu0
    %258 = vmatprep.mubr.f32.mxu0 0.0
    %259 = vmatmul.mubr.f32.gmra.mrb[0].mxu0 %v165
    %v260 = vpop.f32.mrb[0].mxu0
    %v261 = vadd.f32 0.0, %v260
    %v262 = vpop.f32.mrb[0].mxu0
    %263 = vmatprep.mubr.f32.mxu0 0.0
    %264 = vmatmul.mubr.f32.gmra.mrb[0].mxu0 %v168
    %v265 = vpop.f32.mrb[0].mxu0
    %v266 = vadd.f32 0.0, %v265
    %v267 = vpop.f32.mrb[0].mxu0
    %268 = vmatprep.mubr.f32.mxu0 0.0
    %269 = vmatmul.mubr.f32.gmra.mrb[0].mxu0 %v171
    %v270 = vpop.f32.mrb[0].mxu0
    %v271 = vadd.f32 0.0, %v270
    %v272 = vpop.f32.mrb[0].mxu0
    %273 = vmatprep.mubr.f32.mxu0 0.0
    %274 = vmatmul.mubr.f32.gmra.mrb[0].mxu0 %v174
    %v275 = vpop.f32.mrb[0].mxu0
    %v276 = vadd.f32 0.0, %v275
    %v277 = vpop.f32.mrb[0].mxu0
    %278 = vmatprep.mubr.f32.mxu0 0.0
    %279 = vmatmul.mubr.f32.gmra.mrb[0].mxu0 %v177
    %v280 = vpop.f32.mrb[0].mxu0
    %v281 = vadd.f32 0.0, %v280
    %v282 = vpop.f32.mrb[0].mxu0
    %283 = vdwg.mxu0
    %vm284 = vcmask 523264
    %v285 = vsel %vm284, %v246, -inf
    %286 = vmax.xlane.f32.xlu0 %v285
    %v287 = vpop.xlane.xlu0 %286
    %v288 = vsel %vm284, %v251, -inf
    %289 = vmax.xlane.f32.xlu0 %v288
    %v290 = vpop.xlane.xlu0 %289
    %v291 = vsel %vm284, %v256, -inf
    %292 = vmax.xlane.f32.xlu0 %v291
    %v293 = vpop.xlane.xlu0 %292
    %v294 = vsel %vm284, %v261, -inf
    %295 = vmax.xlane.f32.xlu0 %v294
    %v296 = vpop.xlane.xlu0 %295
    %v297 = vsel %vm284, %v266, -inf
    %298 = vmax.xlane.f32.xlu0 %v297
    %v299 = vpop.xlane.xlu0 %298
    %v300 = vsel %vm284, %v271, -inf
    %301 = vmax.xlane.f32.xlu0 %v300
    %v302 = vpop.xlane.xlu0 %301
    %v303 = vsel %vm284, %v276, -inf
    %304 = vmax.xlane.f32.xlu0 %v303
    %v305 = vpop.xlane.xlu0 %304
    %v306 = vsel %vm284, %v281, -inf
    %307 = vmax.xlane.f32.xlu0 %v306
    %v308 = vpop.xlane.xlu0 %307
    %v309 = vsub.f32 %v246, %v287
    %v310 = vsub.f32 %v251, %v290
    %v311 = vsub.f32 %v256, %v293
    %v312 = vsub.f32 %v261, %v296
    %v313 = vsub.f32 %v266, %v299
    %v314 = vsub.f32 %v271, %v302
    %v315 = vsub.f32 %v276, %v305
    %v316 = vsub.f32 %v281, %v308
    %v317 = vmul.f32 %v309, 1.442695
    %v318 = vpow.pop %v317
    %v319 = vmul.f32 %v310, 1.442695
    %v320 = vpow.pop %v319
    %v321 = vmul.f32 %v311, 1.442695
    %v322 = vpow.pop %v321
    %v323 = vmul.f32 %v312, 1.442695
    %v324 = vpow.pop %v323
    %v325 = vmul.f32 %v313, 1.442695
    %v326 = vpow.pop %v325
    %v327 = vmul.f32 %v314, 1.442695
    %v328 = vpow.pop %v327
    %v329 = vmul.f32 %v315, 1.442695
    %v330 = vpow.pop %v329
    %v331 = vmul.f32 %v316, 1.442695
    %v332 = vpow.pop %v331
    %v333 = vsel %vm284, %v318, 0.0
    %334 = vadd.xlane.f32.xlu0 %v333
    %v335 = vpop.xlane.xlu0 %334
    %v336 = vsel %vm284, %v320, 0.0
    %337 = vadd.xlane.f32.xlu0 %v336
    %v338 = vpop.xlane.xlu0 %337
    %v339 = vsel %vm284, %v322, 0.0
    %340 = vadd.xlane.f32.xlu0 %v339
    %v341 = vpop.xlane.xlu0 %340
    %v342 = vsel %vm284, %v324, 0.0
    %343 = vadd.xlane.f32.xlu0 %v342
    %v344 = vpop.xlane.xlu0 %343
    %v345 = vsel %vm284, %v326, 0.0
    %346 = vadd.xlane.f32.xlu0 %v345
    %v347 = vpop.xlane.xlu0 %346
    %v348 = vsel %vm284, %v328, 0.0
    %349 = vadd.xlane.f32.xlu0 %v348
    %v350 = vpop.xlane.xlu0 %349
    %v351 = vsel %vm284, %v330, 0.0
    %352 = vadd.xlane.f32.xlu0 %v351
    %v353 = vpop.xlane.xlu0 %352
    %v354 = vsel %vm284, %v332, 0.0
    %355 = vadd.xlane.f32.xlu0 %v354
    %v356 = vpop.xlane.xlu0 %355
    %v357 = vrcp.pop %v335
    %v358 = vrcp.pop %v338
    %v359 = vrcp.pop %v341
    %v360 = vrcp.pop %v344
    %v361 = vrcp.pop %v347
    %v362 = vrcp.pop %v350
    %v363 = vrcp.pop %v353
    %v364 = vrcp.pop %v356
    %v365 = vmul.f32 %v318, %v357
    %v366 = vmul.f32 %v320, %v358
    %v367 = vmul.f32 %v322, %v359
    %v368 = vmul.f32 %v324, %v360
    %v369 = vmul.f32 %v326, %v361
    %v370 = vmul.f32 %v328, %v362
    %v371 = vmul.f32 %v330, %v363
    %v372 = vmul.f32 %v332, %v364
    %v374 = vsel %vm284, %v113, 0
    %v377 = vsel %vm284, %v118, 0
    %v380 = vsel %vm284, %v365, 0
    %v383 = vsel %vm284, %v366, 0
    %v386 = vsel %vm284, %v367, 0
    %v389 = vsel %vm284, %v368, 0
    %v392 = vsel %vm284, %v369, 0
    %v395 = vsel %vm284, %v370, 0
    %v398 = vsel %vm284, %v371, 0
    %v401 = vsel %vm284, %v372, 0
    %403 = vmatprep.subr.mxu0 0.0
    %404 = vmatpush1.xpose.msra.mxu0 %v380
    %405 = vmatprep.subr.mxu0 0.0
    %406 = vmatpush1.xpose.msra.mxu0 %v383
    %407 = vmatprep.subr.mxu0 0.0
    %408 = vmatpush1.xpose.msra.mxu0 %v386
    %409 = vmatprep.subr.mxu0 0.0
    %410 = vmatpush1.xpose.msra.mxu0 %v389
    %411 = vmatprep.subr.mxu0 0.0
    %412 = vmatpush1.xpose.msra.mxu0 %v392
    %413 = vmatprep.subr.mxu0 0.0
    %414 = vmatpush1.xpose.msra.mxu0 %v395
    %415 = vmatprep.subr.mxu0 0.0
    %416 = vmatpush1.xpose.msra.mxu0 %v398
    %417 = vmatprep.subr.mxu0 0.0
    %418 = vmatpush1.xpose.msra.mxu0 %v401
    %419 = vmatprep.subr.mxu0 0.0
    %420 = vmatpush1.xpose.msra.mxu0 0.0
    %421 = vmatprep.subr.mxu0 0.0
    %422 = vmatpush1.xpose.msra.mxu0 0.0
    %423 = vmatprep.subr.mxu0 0.0
    %424 = vmatpush1.xpose.msra.mxu0 0.0
    %425 = vmatprep.subr.mxu0 0.0
    %426 = vmatpush1.xpose.msra.mxu0 0.0
    %427 = vmatprep.subr.mxu0 0.0
    %428 = vmatpush1.xpose.msra.mxu0 0.0
    %429 = vmatprep.subr.mxu0 0.0
    %430 = vmatpush1.xpose.msra.mxu0 0.0
    %431 = vmatprep.subr.mxu0 0.0
    %432 = vmatpush1.xpose.msra.mxu0 0.0
    %433 = vmatprep.subr.mxu0 0.0
    %434 = vmatpush1.xpose.msra.mxu0 0.0
    %435 = vmatprep.subr.mxu0 0.0
    %436 = vmatpush1.xpose.msra.mxu0 0.0
    %437 = vmatprep.subr.mxu0 0.0
    %438 = vmatpush1.xpose.msra.mxu0 0.0
    %439 = vmatprep.subr.mxu0 0.0
    %440 = vmatpush1.xpose.msra.mxu0 0.0
    %441 = vmatprep.subr.mxu0 0.0
    %442 = vmatpush1.xpose.msra.mxu0 0.0
    %443 = vmatprep.subr.mxu0 0.0
    %444 = vmatpush1.xpose.msra.mxu0 0.0
    %445 = vmatprep.subr.mxu0 0.0
    %446 = vmatpush1.xpose.msra.mxu0 0.0
    %447 = vmatprep.subr.mxu0 0.0
    %448 = vmatpush1.xpose.msra.mxu0 0.0
    %449 = vmatprep.subr.mxu0 0.0
    %450 = vmatpush1.xpose.msra.mxu0 0.0
    %451 = vmatprep.subr.mxu0 0.0
    %452 = vmatpush1.xpose.msra.mxu0 0.0
    %453 = vmatprep.subr.mxu0 0.0
    %454 = vmatpush1.xpose.msra.mxu0 0.0
    %455 = vmatprep.subr.mxu0 0.0
    %456 = vmatpush1.xpose.msra.mxu0 0.0
    %457 = vmatprep.subr.mxu0 0.0
    %458 = vmatpush1.xpose.msra.mxu0 0.0
    %459 = vmatprep.subr.mxu0 0.0
    %460 = vmatpush1.xpose.msra.mxu0 0.0
    %461 = vmatprep.subr.mxu0 0.0
    %462 = vmatpush1.xpose.msra.mxu0 0.0
    %463 = vmatprep.subr.mxu0 0.0
    %464 = vmatpush1.xpose.msra.mxu0 0.0
    %465 = vmatprep.subr.mxu0 0.0
    %466 = vmatpush1.xpose.msra.mxu0 0.0
    %467 = vmatprep.mubr.f32.mxu0 0.0
    %468 = vmatmul.mubr.f32.gmra.mrb[0].mxu0 %v374
    %v469 = vpop.f32.mrb[0].mxu0
    %v470 = vadd.f32 0.0, %v469
    %v471 = vpop.f32.mrb[0].mxu0
    %472 = vmatprep.mubr.f32.mxu0 0.0
    %473 = vmatmul.mubr.f32.gmra.mrb[0].mxu0 %v377
    %v474 = vpop.f32.mrb[0].mxu0
    %v475 = vadd.f32 0.0, %v474
    %v476 = vpop.f32.mrb[0].mxu0
    %477 = vdwg.mxu0
    %v478 = vstv %s121
    %v479 = vmul.f32 %v478, %v470
    %v480 = vmul.f32 %v478, %v475
    %v481 = vadd.f32 %v479, %v16
    %v482 = vadd.f32 %v480, %v17
    %v483 = vxor.u32 %v481, 2147483648
    %v484 = vxor.u32 %v482, 2147483648
    %v485 = vmul.f32 %v483, 1.442695
    %v486 = vpow.pop %v485
    %v487 = vmul.f32 %v484, 1.442695
    %v488 = vpow.pop %v487
    %v489 = vadd.f32 %v486, 1.0
    %v490 = vadd.f32 %v488, 1.0
    %v491 = vrcp.pop %v489
    %v492 = vmul.f32 1.0, %v491
    %v493 = vrcp.pop %v490
    %v494 = vmul.f32 1.0, %v493
    %496 = vrot.lane.b32.xlu0 %v103, 64
    %v497 = vpop.permute.xlu0 %496
    %499 = vxpose.xlu0.b32.start [1/16] %v497, 128
    %500 = vxpose.xlu0.b32.cont [2/16] 0.0, 128
    %501 = vxpose.xlu0.b32.cont [3/16] 0.0, 128
    %502 = vxpose.xlu0.b32.cont [4/16] 0.0, 128
    %503 = vxpose.xlu0.b32.cont [5/16] 0.0, 128
    %504 = vxpose.xlu0.b32.cont [6/16] 0.0, 128
    %505 = vxpose.xlu0.b32.cont [7/16] 0.0, 128
    %506 = vxpose.xlu0.b32.cont [8/16] 0.0, 128
    %507 = vxpose.xlu0.b32.cont [9/16] 0.0, 128
    %508 = vxpose.xlu0.b32.cont [10/16] 0.0, 128
    %509 = vxpose.xlu0.b32.cont [11/16] 0.0, 128
    %510 = vxpose.xlu0.b32.cont [12/16] 0.0, 128
    %511 = vxpose.xlu0.b32.cont [13/16] 0.0, 128
    %512 = vxpose.xlu0.b32.cont [14/16] 0.0, 128
    %513 = vxpose.xlu0.b32.cont [15/16] 0.0, 128
    %514 = vxpose.xlu0.b32.end [16/16] 0.0, 128
    %v515 = vpop.trf.xlu0
    %v516 = vpop.trf.xlu0
    %v517 = vpop.trf.xlu0
    %v518 = vpop.trf.xlu0
    %v519 = vpop.trf.xlu0
    %v520 = vpop.trf.xlu0
    %v521 = vpop.trf.xlu0
    %v522 = vpop.trf.xlu0
    %v523 = vpop.trf.xlu0
    %v524 = vpop.trf.xlu0
    %v525 = vpop.trf.xlu0
    %v526 = vpop.trf.xlu0
    %v527 = vpop.trf.xlu0
    %v528 = vpop.trf.xlu0
    %v529 = vpop.trf.xlu0
    %v530 = vpop.trf.xlu0
    %532 = vrot.lane.b32.xlu0 %v108, 64
    %v533 = vpop.permute.xlu0 %532
    %v536 = vsel %vm154, %v515, 0
    %v539 = vsel %vm154, %v516, 0
    %v542 = vsel %vm154, %v517, 0
    %v545 = vsel %vm154, %v518, 0
    %v548 = vsel %vm154, %v519, 0
    %v551 = vsel %vm154, %v520, 0
    %v554 = vsel %vm154, %v521, 0
    %v557 = vsel %vm154, %v522, 0
    %559 = vmatprep.subr.mxu0 0.0
    %560 = vmatpush1.msra.mxu0 %v533
    %561 = vmatprep.subr.mxu0 0.0
    %562 = vmatpush1.msra.mxu0 0.0
    %563 = vmatprep.subr.mxu0 0.0
    %564 = vmatpush1.msra.mxu0 0.0
    %565 = vmatprep.subr.mxu0 0.0
    %566 = vmatpush1.msra.mxu0 0.0
    %567 = vmatprep.subr.mxu0 0.0
    %568 = vmatpush1.msra.mxu0 0.0
    %569 = vmatprep.subr.mxu0 0.0
    %570 = vmatpush1.msra.mxu0 0.0
    %571 = vmatprep.subr.mxu0 0.0
    %572 = vmatpush1.msra.mxu0 0.0
    %573 = vmatprep.subr.mxu0 0.0
    %574 = vmatpush1.msra.mxu0 0.0
    %575 = vmatprep.subr.mxu0 0.0
    %576 = vmatpush1.msra.mxu0 0.0
    %577 = vmatprep.subr.mxu0 0.0
    %578 = vmatpush1.msra.mxu0 0.0
    %579 = vmatprep.subr.mxu0 0.0
    %580 = vmatpush1.msra.mxu0 0.0
    %581 = vmatprep.subr.mxu0 0.0
    %582 = vmatpush1.msra.mxu0 0.0
    %583 = vmatprep.subr.mxu0 0.0
    %584 = vmatpush1.msra.mxu0 0.0
    %585 = vmatprep.subr.mxu0 0.0
    %586 = vmatpush1.msra.mxu0 0.0
    %587 = vmatprep.subr.mxu0 0.0
    %588 = vmatpush1.msra.mxu0 0.0
    %589 = vmatprep.subr.mxu0 0.0
    %590 = vmatpush1.msra.mxu0 0.0
    %591 = vmatprep.subr.mxu0 0.0
    %592 = vmatpush1.msra.mxu0 0.0
    %593 = vmatprep.subr.mxu0 0.0
    %594 = vmatpush1.msra.mxu0 0.0
    %595 = vmatprep.subr.mxu0 0.0
    %596 = vmatpush1.msra.mxu0 0.0
    %597 = vmatprep.subr.mxu0 0.0
    %598 = vmatpush1.msra.mxu0 0.0
    %599 = vmatprep.subr.mxu0 0.0
    %600 = vmatpush1.msra.mxu0 0.0
    %601 = vmatprep.subr.mxu0 0.0
    %602 = vmatpush1.msra.mxu0 0.0
    %603 = vmatprep.subr.mxu0 0.0
    %604 = vmatpush1.msra.mxu0 0.0
    %605 = vmatprep.subr.mxu0 0.0
    %606 = vmatpush1.msra.mxu0 0.0
    %607 = vmatprep.subr.mxu0 0.0
    %608 = vmatpush1.msra.mxu0 0.0
    %609 = vmatprep.subr.mxu0 0.0
    %610 = vmatpush1.msra.mxu0 0.0
    %611 = vmatprep.subr.mxu0 0.0
    %612 = vmatpush1.msra.mxu0 0.0
    %613 = vmatprep.subr.mxu0 0.0
    %614 = vmatpush1.msra.mxu0 0.0
    %615 = vmatprep.subr.mxu0 0.0
    %616 = vmatpush1.msra.mxu0 0.0
    %617 = vmatprep.subr.mxu0 0.0
    %618 = vmatpush1.msra.mxu0 0.0
    %619 = vmatprep.subr.mxu0 0.0
    %620 = vmatpush1.msra.mxu0 0.0
    %621 = vmatprep.subr.mxu0 0.0
    %622 = vmatpush1.msra.mxu0 0.0
    %623 = vmatprep.mubr.f32.mxu0 0.0
    %624 = vmatmul.mubr.f32.gmra.mrb[0].mxu0 %v536
    %v625 = vpop.f32.mrb[0].mxu0
    %v626 = vadd.f32 0.0, %v625
    %v627 = vpop.f32.mrb[0].mxu0
    %628 = vmatprep.mubr.f32.mxu0 0.0
    %629 = vmatmul.mubr.f32.gmra.mrb[0].mxu0 %v539
    %v630 = vpop.f32.mrb[0].mxu0
    %v631 = vadd.f32 0.0, %v630
    %v632 = vpop.f32.mrb[0].mxu0
    %633 = vmatprep.mubr.f32.mxu0 0.0
    %634 = vmatmul.mubr.f32.gmra.mrb[0].mxu0 %v542
    %v635 = vpop.f32.mrb[0].mxu0
    %v636 = vadd.f32 0.0, %v635
    %v637 = vpop.f32.mrb[0].mxu0
    %638 = vmatprep.mubr.f32.mxu0 0.0
    %639 = vmatmul.mubr.f32.gmra.mrb[0].mxu0 %v545
    %v640 = vpop.f32.mrb[0].mxu0
    %v641 = vadd.f32 0.0, %v640
    %v642 = vpop.f32.mrb[0].mxu0
    %643 = vmatprep.mubr.f32.mxu0 0.0
    %644 = vmatmul.mubr.f32.gmra.mrb[0].mxu0 %v548
    %v645 = vpop.f32.mrb[0].mxu0
    %v646 = vadd.f32 0.0, %v645
    %v647 = vpop.f32.mrb[0].mxu0
    %648 = vmatprep.mubr.f32.mxu0 0.0
    %649 = vmatmul.mubr.f32.gmra.mrb[0].mxu0 %v551
    %v650 = vpop.f32.mrb[0].mxu0
    %v651 = vadd.f32 0.0, %v650
    %v652 = vpop.f32.mrb[0].mxu0
    %653 = vmatprep.mubr.f32.mxu0 0.0
    %654 = vmatmul.mubr.f32.gmra.mrb[0].mxu0 %v554
    %v655 = vpop.f32.mrb[0].mxu0
    %v656 = vadd.f32 0.0, %v655
    %v657 = vpop.f32.mrb[0].mxu0
    %658 = vmatprep.mubr.f32.mxu0 0.0
    %659 = vmatmul.mubr.f32.gmra.mrb[0].mxu0 %v557
    %v660 = vpop.f32.mrb[0].mxu0
    %v661 = vadd.f32 0.0, %v660
    %v662 = vpop.f32.mrb[0].mxu0
    %663 = vdwg.mxu0
    %v664 = vsel %vm284, %v626, -inf
    %665 = vmax.xlane.f32.xlu0 %v664
    %v666 = vpop.xlane.xlu0 %665
    %v667 = vsel %vm284, %v631, -inf
    %668 = vmax.xlane.f32.xlu0 %v667
    %v669 = vpop.xlane.xlu0 %668
    %v670 = vsel %vm284, %v636, -inf
    %671 = vmax.xlane.f32.xlu0 %v670
    %v672 = vpop.xlane.xlu0 %671
    %v673 = vsel %vm284, %v641, -inf
    %674 = vmax.xlane.f32.xlu0 %v673
    %v675 = vpop.xlane.xlu0 %674
    %v676 = vsel %vm284, %v646, -inf
    %677 = vmax.xlane.f32.xlu0 %v676
    %v678 = vpop.xlane.xlu0 %677
    %v679 = vsel %vm284, %v651, -inf
    %680 = vmax.xlane.f32.xlu0 %v679
    %v681 = vpop.xlane.xlu0 %680
    %v682 = vsel %vm284, %v656, -inf
    %683 = vmax.xlane.f32.xlu0 %v682
    %v684 = vpop.xlane.xlu0 %683
    %v685 = vsel %vm284, %v661, -inf
    %686 = vmax.xlane.f32.xlu0 %v685
    %v687 = vpop.xlane.xlu0 %686
    %v688 = vsub.f32 %v626, %v666
    %v689 = vsub.f32 %v631, %v669
    %v690 = vsub.f32 %v636, %v672
    %v691 = vsub.f32 %v641, %v675
    %v692 = vsub.f32 %v646, %v678
    %v693 = vsub.f32 %v651, %v681
    %v694 = vsub.f32 %v656, %v684
    %v695 = vsub.f32 %v661, %v687
    %v696 = vmul.f32 %v688, 1.442695
    %v697 = vpow.pop %v696
    %v698 = vmul.f32 %v689, 1.442695
    %v699 = vpow.pop %v698
    %v700 = vmul.f32 %v690, 1.442695
    %v701 = vpow.pop %v700
    %v702 = vmul.f32 %v691, 1.442695
    %v703 = vpow.pop %v702
    %v704 = vmul.f32 %v692, 1.442695
    %v705 = vpow.pop %v704
    %v706 = vmul.f32 %v693, 1.442695
    %v707 = vpow.pop %v706
    %v708 = vmul.f32 %v694, 1.442695
    %v709 = vpow.pop %v708
    %v710 = vmul.f32 %v695, 1.442695
    %v711 = vpow.pop %v710
    %v712 = vsel %vm284, %v697, 0.0
    %713 = vadd.xlane.f32.xlu0 %v712
    %v714 = vpop.xlane.xlu0 %713
    %v715 = vsel %vm284, %v699, 0.0
    %716 = vadd.xlane.f32.xlu0 %v715
    %v717 = vpop.xlane.xlu0 %716
    %v718 = vsel %vm284, %v701, 0.0
    %719 = vadd.xlane.f32.xlu0 %v718
    %v720 = vpop.xlane.xlu0 %719
    %v721 = vsel %vm284, %v703, 0.0
    %722 = vadd.xlane.f32.xlu0 %v721
    %v723 = vpop.xlane.xlu0 %722
    %v724 = vsel %vm284, %v705, 0.0
    %725 = vadd.xlane.f32.xlu0 %v724
    %v726 = vpop.xlane.xlu0 %725
    %v727 = vsel %vm284, %v707, 0.0
    %728 = vadd.xlane.f32.xlu0 %v727
    %v729 = vpop.xlane.xlu0 %728
    %v730 = vsel %vm284, %v709, 0.0
    %731 = vadd.xlane.f32.xlu0 %v730
    %v732 = vpop.xlane.xlu0 %731
    %v733 = vsel %vm284, %v711, 0.0
    %734 = vadd.xlane.f32.xlu0 %v733
    %v735 = vpop.xlane.xlu0 %734
    %v736 = vrcp.pop %v714
    %v737 = vrcp.pop %v717
    %v738 = vrcp.pop %v720
    %v739 = vrcp.pop %v723
    %v740 = vrcp.pop %v726
    %v741 = vrcp.pop %v729
    %v742 = vrcp.pop %v732
    %v743 = vrcp.pop %v735
    %v744 = vmul.f32 %v697, %v736
    %v745 = vmul.f32 %v699, %v737
    %v746 = vmul.f32 %v701, %v738
    %v747 = vmul.f32 %v703, %v739
    %v748 = vmul.f32 %v705, %v740
    %v749 = vmul.f32 %v707, %v741
    %v750 = vmul.f32 %v709, %v742
    %v751 = vmul.f32 %v711, %v743
    %752 = vrot.lane.b32.xlu0 %v113, 64
    %v753 = vpop.permute.xlu0 %752
    %754 = vrot.lane.b32.xlu0 %v118, 64
    %v755 = vpop.permute.xlu0 %754
    %v756 = vsel %vm284, %v753, 0
    %v758 = vsel %vm284, %v755, 0
    %v761 = vsel %vm284, %v744, 0
    %v764 = vsel %vm284, %v745, 0
    %v767 = vsel %vm284, %v746, 0
    %v770 = vsel %vm284, %v747, 0
    %v773 = vsel %vm284, %v748, 0
    %v776 = vsel %vm284, %v749, 0
    %v779 = vsel %vm284, %v750, 0
    %v782 = vsel %vm284, %v751, 0
    %784 = vmatprep.subr.mxu0 0.0
    %785 = vmatpush1.xpose.msra.mxu0 %v761
    %786 = vmatprep.subr.mxu0 0.0
    %787 = vmatpush1.xpose.msra.mxu0 %v764
    %788 = vmatprep.subr.mxu0 0.0
    %789 = vmatpush1.xpose.msra.mxu0 %v767
    %790 = vmatprep.subr.mxu0 0.0
    %791 = vmatpush1.xpose.msra.mxu0 %v770
    %792 = vmatprep.subr.mxu0 0.0
    %793 = vmatpush1.xpose.msra.mxu0 %v773
    %794 = vmatprep.subr.mxu0 0.0
    %795 = vmatpush1.xpose.msra.mxu0 %v776
    %796 = vmatprep.subr.mxu0 0.0
    %797 = vmatpush1.xpose.msra.mxu0 %v779
    %798 = vmatprep.subr.mxu0 0.0
    %799 = vmatpush1.xpose.msra.mxu0 %v782
    %800 = vmatprep.subr.mxu0 0.0
    %801 = vmatpush1.xpose.msra.mxu0 0.0
    %802 = vmatprep.subr.mxu0 0.0
    %803 = vmatpush1.xpose.msra.mxu0 0.0
    %804 = vmatprep.subr.mxu0 0.0
    %805 = vmatpush1.xpose.msra.mxu0 0.0
    %806 = vmatprep.subr.mxu0 0.0
    %807 = vmatpush1.xpose.msra.mxu0 0.0
    %808 = vmatprep.subr.mxu0 0.0
    %809 = vmatpush1.xpose.msra.mxu0 0.0
    %810 = vmatprep.subr.mxu0 0.0
    %811 = vmatpush1.xpose.msra.mxu0 0.0
    %812 = vmatprep.subr.mxu0 0.0
    %813 = vmatpush1.xpose.msra.mxu0 0.0
    %814 = vmatprep.subr.mxu0 0.0
    %815 = vmatpush1.xpose.msra.mxu0 0.0
    %816 = vmatprep.subr.mxu0 0.0
    %817 = vmatpush1.xpose.msra.mxu0 0.0
    %818 = vmatprep.subr.mxu0 0.0
    %819 = vmatpush1.xpose.msra.mxu0 0.0
    %820 = vmatprep.subr.mxu0 0.0
    %821 = vmatpush1.xpose.msra.mxu0 0.0
    %822 = vmatprep.subr.mxu0 0.0
    %823 = vmatpush1.xpose.msra.mxu0 0.0
    %824 = vmatprep.subr.mxu0 0.0
    %825 = vmatpush1.xpose.msra.mxu0 0.0
    %826 = vmatprep.subr.mxu0 0.0
    %827 = vmatpush1.xpose.msra.mxu0 0.0
    %828 = vmatprep.subr.mxu0 0.0
    %829 = vmatpush1.xpose.msra.mxu0 0.0
    %830 = vmatprep.subr.mxu0 0.0
    %831 = vmatpush1.xpose.msra.mxu0 0.0
    %832 = vmatprep.subr.mxu0 0.0
    %833 = vmatpush1.xpose.msra.mxu0 0.0
    %834 = vmatprep.subr.mxu0 0.0
    %835 = vmatpush1.xpose.msra.mxu0 0.0
    %836 = vmatprep.subr.mxu0 0.0
    %837 = vmatpush1.xpose.msra.mxu0 0.0
    %838 = vmatprep.subr.mxu0 0.0
    %839 = vmatpush1.xpose.msra.mxu0 0.0
    %840 = vmatprep.subr.mxu0 0.0
    %841 = vmatpush1.xpose.msra.mxu0 0.0
    %842 = vmatprep.subr.mxu0 0.0
    %843 = vmatpush1.xpose.msra.mxu0 0.0
    %844 = vmatprep.subr.mxu0 0.0
    %845 = vmatpush1.xpose.msra.mxu0 0.0
    %846 = vmatprep.subr.mxu0 0.0
    %847 = vmatpush1.xpose.msra.mxu0 0.0
    %848 = vmatprep.mubr.f32.mxu0 0.0
    %849 = vmatmul.mubr.f32.gmra.mrb[0].mxu0 %v756
    %v850 = vpop.f32.mrb[0].mxu0
    %v851 = vadd.f32 0.0, %v850
    %v852 = vpop.f32.mrb[0].mxu0
    %853 = vmatprep.mubr.f32.mxu0 0.0
    %854 = vmatmul.mubr.f32.gmra.mrb[0].mxu0 %v758
    %v855 = vpop.f32.mrb[0].mxu0
    %v856 = vadd.f32 0.0, %v855
    %v857 = vpop.f32.mrb[0].mxu0
    %858 = vdwg.mxu0
    %v859 = vmul.f32 %v478, %v851
    %v860 = vmul.f32 %v478, %v856
    %863 = vrot.lane.b32.xlu0 %v16, 64
    %v864 = vpop.permute.xlu0 %863
    %865 = vrot.lane.b32.xlu0 %v17, 64
    %v866 = vpop.permute.xlu0 %865
    %v869 = vadd.f32 %v859, %v864
    %v870 = vadd.f32 %v860, %v866
    %v871 = vxor.u32 %v869, 2147483648
    %v872 = vxor.u32 %v870, 2147483648
    %v873 = vmul.f32 %v871, 1.442695
    %v874 = vpow.pop %v873
    %v875 = vmul.f32 %v872, 1.442695
    %v876 = vpow.pop %v875
    %v877 = vadd.f32 %v874, 1.0
    %v878 = vadd.f32 %v876, 1.0
    %v879 = vrcp.pop %v877
    %v880 = vmul.f32 1.0, %v879
    %v881 = vrcp.pop %v878
    %v882 = vmul.f32 1.0, %v881
    %885 = vrot.lane.b32.xlu0 %v880, 64
    %v886 = vpop.permute.xlu0 %885
    %887 = vrot.lane.b32.xlu0 %v882, 64
    %v888 = vpop.permute.xlu0 %887
    %v891 = vsel %vm284, %v492, %v886
    %v892 = vsel %vm284, %v494, %v888
    %893 = vst [vmem:[#allocation3] sm:$0xff] %v891
    %894 = vst [vmem:[#allocation3 + $0x8] sm:$0xff] %v892
    // Predicated region
    $region14: #{tpu_custom_call.1} parent=1 // pred_check
      _
    $region15: #{tpu_custom_call.1} parent=1 // pred_check_branch
      %896 = sbr.rel (0) target = $region17
    $region16: #{tpu_custom_call.1} parent=1 // pred_region
      %s898 = ssub.s32 256, 256
      %899 = vsyncadd [#allocation4], %s898
      %s900 = sshll.u32 [#allocation3], 4
      %s901 = int_to_ptr.vmem [resolvable:$true] %s900
      %906 = dma.vmem_to_hbm [thread:$0]  %s901, 256, %s3, [#allocation4], 128, 128, 8
    $region17: #{tpu_custom_call.1} parent=1 // pred_fallthru
      _
    // Predicated region
    $region18: #{tpu_custom_call.1} parent=1 // pred_check
      _
    $region19: #{tpu_custom_call.1} parent=1 // pred_check_branch
      %908 = sbr.rel (0) target = $region21
    $region20: #{tpu_custom_call.1} parent=1 // pred_region
      %909 = dma.done [#allocation4], 256
    $region21: #{tpu_custom_call.1} parent=1 // pred_fallthru
      _
    %910 = vsyncpa [#allocation4], 1

</llo_original>
